<compile_context>
chip_gen: v7x
topology: tpu7x:2x2x1
jax: 0.10.0
libtpu: 0.0.40
codegen_flags: <defaults>
</compile_context>

<pallas_src>
import functools

import jax
import jax.numpy as jnp
from jax.experimental import pallas as pl
from jax.experimental.pallas import tpu as pltpu

EPS = 1e-6
MOMENTUM = 0.1
_LANE = 128
_SUBLANE = 8


# ---------------------------------------------------------------------------
# VMEM budgets (generation aware).
# ---------------------------------------------------------------------------
def _vmem_budgets():
    cap = None
    try:
        cap = pltpu.get_tpu_info().vmem_capacity_bytes
    except Exception:
        cap = None
    if not isinstance(cap, int) or cap <= 0:
        cap = 64 * 1024 * 1024                       # conservative (v7x-sized)
    vmem_limit = min((cap * 3) // 4, 96 * 1024 * 1024)   # 48 MiB v7x, 96 MiB v5e/v6e
    strip_budget = vmem_limit // 2                        # big double-buffered strips
    return strip_budget, vmem_limit


# ---------------------------------------------------------------------------
# Tile pickers.
# ---------------------------------------------------------------------------
def _pick_train_tile(n_rows, d, strip_budget_bytes):
    """Feature tile for the single-pass (resident (N, tD) strip) training path.
    Returns None when even a 128-wide strip would blow the VMEM budget."""
    budget_elems = strip_budget_bytes // 16          # f32 x-in + xn-out, 2 buffers each
    if d <= _LANE:
        return d if n_rows * d <= budget_elems else None
    max_td = (budget_elems // max(n_rows, 1) // _LANE) * _LANE
    if max_td < _LANE:
        return None                                  # -> two-pass accumulator path
    # Prefer >=4 feature steps (>=2 for small D) so DMA pipelines and both v7x
    # TensorCores get work on the "parallel" axis.
    target_steps = 4 if d >= 4 * _LANE else 2
    cap = max(_LANE, (d // (target_steps * _LANE)) * _LANE)
    return min(max_td, cap, 1024)


def _pick_2d_tiles(n, d, strip_budget_bytes, bytes_per_elem):
    """(tN, tD) tiles for elementwise / accumulator passes.
    bytes_per_elem: 16 for f32 in+out double-buffered, 8 for in-only."""
    budget_elems = strip_budget_bytes // bytes_per_elem
    if d <= _LANE:
        td = d
    else:
        td = min(1024, max(_LANE, (min(d, 1024) // _LANE) * _LANE))
    max_tn = max(_SUBLANE, budget_elems // max(td, 1))
    if n <= max_tn:
        tn = n                                       # full batch dim (always legal)
    else:
        tn = max(_SUBLANE, min(1024, (max_tn // _SUBLANE) * _SUBLANE))
    return tn, td


# ---------------------------------------------------------------------------
# Kernels.
# ---------------------------------------------------------------------------
def _bn_train_kernel(x_ref, mu_run_ref, sig2_run_ref,
                     xn_ref, var_ref, new_mu_ref, new_sig2_ref, *, n_rows):
    """Single-pass training: batch stats + normalize + fused running-stat EMA.
    Grid: (D_tiles,) -- each step sees the full batch for one feature strip."""
    x = x_ref[...].astype(jnp.float32)               # (N, tD)
    inv_n = 1.0 / n_rows
    s1 = jnp.sum(x, axis=0, keepdims=True)           # one sweep: sum(x), sum(x*x)
    s2 = jnp.sum(x * x, axis=0, keepdims=True)
    mu = s1 * inv_n
    sig2 = jnp.maximum(s2 * inv_n - mu * mu, 0.0)    # E[x^2] - mu^2
    var = sig2 + EPS
    inv_std = jax.lax.rsqrt(var)
    xn_ref[...] = ((x - mu) * inv_std).astype(xn_ref.dtype)
    var_ref[...] = var.astype(var_ref.dtype)
    # Fused EMA (replaces the nn.Parameter reassignment in the PyTorch module).
    new_mu_ref[...] = (MOMENTUM * mu
                       + (1.0 - MOMENTUM) * mu_run_ref[...].astype(jnp.float32)
                       ).astype(new_mu_ref.dtype)
    new_sig2_ref[...] = (MOMENTUM * sig2
                         + (1.0 - MOMENTUM) * sig2_run_ref[...].astype(jnp.float32)
                         ).astype(new_sig2_ref.dtype)


def _bn_stats_kernel(x_ref, mu_run_ref, sig2_run_ref,
                     mu_ref, var_ref, new_mu_ref, new_sig2_ref,
                     s1_ref, s2_ref, *, n_rows, tn):
    """Accumulator stats pass for large N.
    Grid: (D_tiles, N_tiles), batch axis last ("arbitrary")."""
    ni = pl.program_id(1)

    @pl.when(ni == 0)
    def _():
        s1_ref[...] = jnp.zeros_like(s1_ref)
        s2_ref[...] = jnp.zeros_like(s2_ref)

    x = x_ref[...].astype(jnp.float32)               # (tN, tD)
    row = jax.lax.broadcasted_iota(jnp.int32, x.shape, 0) + ni * tn
    xm = jnp.where(row < n_rows, x, 0.0)             # mask ragged last batch tile
    s1_ref[...] += jnp.sum(xm, axis=0, keepdims=True)
    s2_ref[...] += jnp.sum(xm * xm, axis=0, keepdims=True)

    @pl.when(ni == pl.num_programs(1) - 1)
    def _():
        inv_n = 1.0 / n_rows
        mu = s1_ref[...] * inv_n
        sig2 = jnp.maximum(s2_ref[...] * inv_n - mu * mu, 0.0)
        mu_ref[...] = mu.astype(mu_ref.dtype)
        var_ref[...] = (sig2 + EPS).astype(var_ref.dtype)
        new_mu_ref[...] = (MOMENTUM * mu
                           + (1.0 - MOMENTUM) * mu_run_ref[...].astype(jnp.float32)
                           ).astype(new_mu_ref.dtype)
        new_sig2_ref[...] = (MOMENTUM * sig2
                             + (1.0 - MOMENTUM) * sig2_run_ref[...].astype(jnp.float32)
                             ).astype(new_sig2_ref.dtype)


def _bn_norm_kernel(x_ref, mu_ref, inv_std_ref, xn_ref):
    """Pure elementwise normalize: used for eval and the two-pass training path.
    No resident output -> both grid axes can be 'parallel'."""
    xn_ref[...] = ((x_ref[...].astype(jnp.float32)
                    - mu_ref[...].astype(jnp.float32))
                   * inv_std_ref[...].astype(jnp.float32)).astype(xn_ref.dtype)


# ---------------------------------------------------------------------------
# Wrappers.
# ---------------------------------------------------------------------------
def _normalize(x, mu2d, inv_std2d, strip_budget, vmem_limit):
    N, D = x.shape
    tn, td = _pick_2d_tiles(N, D, strip_budget, bytes_per_elem=16)
    nN, nD = pl.cdiv(N, tn), pl.cdiv(D, td)
    return pl.pallas_call(
        _bn_norm_kernel,
        out_shape=jax.ShapeDtypeStruct((N, D), x.dtype),
        grid=(nN, nD),
        in_specs=[
            pl.BlockSpec((tn, td), lambda i, j: (i, j)),
            pl.BlockSpec((1, td), lambda i, j: (0, j)),
            pl.BlockSpec((1, td), lambda i, j: (0, j)),
        ],
        out_specs=pl.BlockSpec((tn, td), lambda i, j: (i, j)),
        compiler_params=pltpu.CompilerParams(
            dimension_semantics=("parallel", "parallel"),
            vmem_limit_bytes=vmem_limit,
        ),
        cost_estimate=pl.CostEstimate(
            flops=2 * N * D, transcendentals=0,
            bytes_accessed=4 * (2 * N * D + 2 * D)),
    )(x, mu2d, inv_std2d)


def _train_single_pass(x, mu2d, sig2d, td, vmem_limit):
    N, D = x.shape
    nD = pl.cdiv(D, td)
    big = pl.BlockSpec((N, td), lambda j: (0, j))
    stat = pl.BlockSpec((1, td), lambda j: (0, j))
    xn, var, new_mu, new_sig2 = pl.pallas_call(
        functools.partial(_bn_train_kernel, n_rows=N),
        out_shape=(
            jax.ShapeDtypeStruct((N, D), x.dtype),
            jax.ShapeDtypeStruct((1, D), x.dtype),
            jax.ShapeDtypeStruct((1, D), x.dtype),
            jax.ShapeDtypeStruct((1, D), x.dtype),
        ),
        grid=(nD,),
        in_specs=[big, stat, stat],
        out_specs=(big, stat, stat, stat),
        compiler_params=pltpu.CompilerParams(
            dimension_semantics=("parallel",),
            vmem_limit_bytes=vmem_limit,
        ),
        cost_estimate=pl.CostEstimate(
            flops=5 * N * D + 10 * D, transcendentals=D,
            bytes_accessed=4 * (2 * N * D + 7 * D)),
    )(x, mu2d, sig2d)
    return xn, var[0], new_mu[0], new_sig2[0]


def _train_two_pass(x, mu2d, sig2d, strip_budget, vmem_limit, test_tn=None):
    """Large-N training: accumulator stats pass + elementwise normalize pass."""
    N, D = x.shape
    tn, td = _pick_2d_tiles(N, D, strip_budget, bytes_per_elem=8)   # x-in only
    if test_tn is not None:
        tn = test_tn
    nN, nD = pl.cdiv(N, tn), pl.cdiv(D, td)
    stat = pl.BlockSpec((1, td), lambda dj, ni: (0, dj))
    mu_b, var, new_mu, new_sig2 = pl.pallas_call(
        functools.partial(_bn_stats_kernel, n_rows=N, tn=tn),
        out_shape=tuple(jax.ShapeDtypeStruct((1, D), x.dtype) for _ in range(4)),
        grid=(nD, nN),
        in_specs=[pl.BlockSpec((tn, td), lambda dj, ni: (ni, dj)), stat, stat],
        out_specs=(stat, stat, stat, stat),
        scratch_shapes=[pltpu.VMEM((1, td), jnp.float32),
                        pltpu.VMEM((1, td), jnp.float32)],
        compiler_params=pltpu.CompilerParams(
            dimension_semantics=("parallel", "arbitrary"),
            vmem_limit_bytes=vmem_limit,
        ),
        cost_estimate=pl.CostEstimate(
            flops=4 * N * D + 12 * D, transcendentals=0,
            bytes_accessed=4 * (N * D + 6 * D)),
    )(x, mu2d, sig2d)
    inv_std = jax.lax.rsqrt(var.astype(jnp.float32)).astype(x.dtype)  # var = sig2+eps
    xn = _normalize(x, mu_b, inv_std, strip_budget, vmem_limit)
    return xn, var[0], new_mu[0], new_sig2[0]


def batchnorm_train(x, mu_run, sig2_run, *, force_two_pass=False, _test_batch_tile=None):
    """Training-mode forward.

    Returns (x_normalized, sig2 + eps, new_mu_run, new_sig2_run); the first two
    match the PyTorch forward() outputs, the last two are the EMA-updated
    running stats (the functional equivalent of the nn.Parameter reassignment)."""
    N, D = x.shape
    strip_budget, vmem_limit = _vmem_budgets()
    mu2d = mu_run.reshape(1, D).astype(x.dtype)
    sig2d = sig2_run.reshape(1, D).astype(x.dtype)
    td = None if force_two_pass else _pick_train_tile(N, D, strip_budget)
    if td is not None:
        return _train_single_pass(x, mu2d, sig2d, td, vmem_limit)
    return _train_two_pass(x, mu2d, sig2d, strip_budget, vmem_limit, _test_batch_tile)


def batchnorm_eval(x, mu, sig2):
    """Eval-mode forward: returns (x_normalized, sig2 + eps)."""
    N, D = x.shape
    strip_budget, vmem_limit = _vmem_budgets()
    var = (sig2.astype(jnp.float32) + EPS).astype(x.dtype)       # trivial (D,) op
    inv_std = jax.lax.rsqrt(sig2.astype(jnp.float32) + EPS).astype(x.dtype)
    xn = _normalize(x, mu.reshape(1, D).astype(x.dtype),
                    inv_std.reshape(1, D), strip_budget, vmem_limit)
    return xn, var


# ---------------------------------------------------------------------------
# Self-test.
# ---------------------------------------------------------------------------
if __name__ == "__main__":
    key = jax.random.PRNGKey(0)
    k1, k2 = jax.random.split(key)

    def reference(x, mu_p, sig2_p):
        mu = x.mean(0)
        sig2 = ((x - mu) ** 2).mean(0)
        xn = (x - mu) / jnp.sqrt(sig2 + EPS)
        new_mu = MOMENTUM * mu + (1.0 - MOMENTUM) * mu_p
        new_sig2 = MOMENTUM * sig2 + (1.0 - MOMENTUM) * sig2_p
        return xn, sig2 + EPS, new_mu, new_sig2

    def check(name, got, want, atol):
        assert jnp.allclose(got, want, atol=atol), (
            f"{name} mismatch, max err {float(jnp.max(jnp.abs(got - want)))}")

    # --- case 1: tiny module-like shape (single-pass resident-strip path) ---
    N, D = 8, 32
    x = jax.random.normal(k1, (N, D), dtype=jnp.float32)
    mu_p = jnp.zeros((D,), jnp.float32)               # torch.zeros(dim_in)
    sig2_p = jnp.zeros((D,), jnp.float32) + 0.1       # torch.zeros(dim_in) + 0.1

    xn, var, mu_new, sig2_new = batchnorm_train(x, mu_p, sig2_p)
    jax.block_until_ready((xn, var, mu_new, sig2_new))
    xn_r, var_r, mu_r, sig2_r = reference(x, mu_p, sig2_p)
    check("train.xn", xn, xn_r, 1e-4)
    check("train.var", var, var_r, 1e-5)
    check("train.mu_run", mu_new, mu_r, 1e-5)
    check("train.sig2_run", sig2_new, sig2_r, 1e-5)

    xn_e, var_e = batchnorm_eval(x, mu_new, sig2_new)
    jax.block_until_ready((xn_e, var_e))
    check("eval.xn", xn_e, (x - mu_r) / jnp.sqrt(sig2_r + EPS), 1e-4)
    check("eval.var", var_e, sig2_r + EPS, 1e-5)

    # --- case 2: ragged feature/batch tiles + forced two-pass accumulator ---
    N2, D2 = 40, 200
    x2 = jax.random.normal(k2, (N2, D2), dtype=jnp.float32)
    mu_p2 = jnp.zeros((D2,), jnp.float32)
    sig2_p2 = jnp.zeros((D2,), jnp.float32) + 0.1

    xn2, var2, mu2_new, sig22_new = batchnorm_train(
        x2, mu_p2, sig2_p2, force_two_pass=True, _test_batch_tile=16)
    jax.block_until_ready((xn2, var2, mu2_new, sig22_new))
    xn2_r, var2_r, mu2_r, sig22_r = reference(x2, mu_p2, sig2_p2)
    check("train2.xn", xn2, xn2_r, 1e-4)
    check("train2.var", var2, var2_r, 1e-5)
    check("train2.mu_run", mu2_new, mu2_r, 1e-5)
    check("train2.sig2_run", sig22_new, sig22_r, 1e-5)

    xn2_e, var2_e = batchnorm_eval(x2, mu2_new, sig22_new)
    jax.block_until_ready((xn2_e, var2_e))
    check("eval2.xn", xn2_e, (x2 - mu2_r) / jnp.sqrt(sig22_r + EPS), 1e-4)
    check("eval2.var", var2_e, sig22_r + EPS, 1e-5)

    print("KERNEL_OK")
</pallas_src>

<mosaic_0001>
module attributes {stable_mosaic.version = 11 : i64} {
  func.func @_bn_train_kernel(%arg0: i32, %arg1: memref<8x32xf32, #tpu.memory_space<vmem>>, %arg2: memref<1x32xf32, #tpu.memory_space<vmem>>, %arg3: memref<1x32xf32, #tpu.memory_space<vmem>>, %arg4: memref<8x32xf32, #tpu.memory_space<vmem>>, %arg5: memref<1x32xf32, #tpu.memory_space<vmem>>, %arg6: memref<1x32xf32, #tpu.memory_space<vmem>>, %arg7: memref<1x32xf32, #tpu.memory_space<vmem>>) attributes {dimension_semantics = [#tpu.dimension_semantics<parallel>], iteration_bounds = array<i64: 1>, scalar_prefetch = 0 : i64, scratch_operands = 0 : i64, tpu.core_type = #tpu.core_type<tc>, window_params = [{transform_indices = @transform_0, window_bounds = array<i64: 8, 32>}, {transform_indices = @transform_1, window_bounds = array<i64: 1, 32>}, {transform_indices = @transform_2, window_bounds = array<i64: 1, 32>}, {transform_indices = @transform_3, window_bounds = array<i64: 8, 32>}, {transform_indices = @transform_4, window_bounds = array<i64: 1, 32>}, {transform_indices = @transform_5, window_bounds = array<i64: 1, 32>}, {transform_indices = @transform_6, window_bounds = array<i64: 1, 32>}]} {
    %c0 = arith.constant 0 : index
    %c0_0 = arith.constant 0 : index
    %0 = vector.load %arg1[%c0, %c0_0] : memref<8x32xf32, #tpu.memory_space<vmem>>, vector<8x32xf32>
    %cst = arith.constant dense<0.000000e+00> : vector<32xf32>
    %1 = vector.multi_reduction <add>, %0, %cst [0] : vector<8x32xf32> to vector<32xf32>
    %2 = vector.shape_cast %1 : vector<32xf32> to vector<1x32xf32>
    %3 = arith.mulf %0, %0 : vector<8x32xf32>
    %cst_1 = arith.constant dense<0.000000e+00> : vector<32xf32>
    %4 = vector.multi_reduction <add>, %3, %cst_1 [0] : vector<8x32xf32> to vector<32xf32>
    %5 = vector.shape_cast %4 : vector<32xf32> to vector<1x32xf32>
    %cst_2 = arith.constant 1.250000e-01 : f32
    %6 = vector.broadcast %cst_2 : f32 to vector<1x32xf32>
    %7 = arith.mulf %2, %6 : vector<1x32xf32>
    %cst_3 = arith.constant 1.250000e-01 : f32
    %8 = vector.broadcast %cst_3 : f32 to vector<1x32xf32>
    %9 = arith.mulf %5, %8 : vector<1x32xf32>
    %10 = arith.mulf %7, %7 : vector<1x32xf32>
    %11 = arith.subf %9, %10 : vector<1x32xf32>
    %cst_4 = arith.constant 0.000000e+00 : f32
    %12 = vector.broadcast %cst_4 : f32 to vector<1x32xf32>
    %13 = arith.maximumf %11, %12 : vector<1x32xf32>
    %cst_5 = arith.constant 9.99999997E-7 : f32
    %14 = vector.broadcast %cst_5 : f32 to vector<1x32xf32>
    %15 = arith.addf %13, %14 : vector<1x32xf32>
    %16 = math.rsqrt %15 : vector<1x32xf32>
    %17 = vector.broadcast %7 : vector<1x32xf32> to vector<8x32xf32>
    %18 = arith.subf %0, %17 : vector<8x32xf32>
    %19 = vector.broadcast %16 : vector<1x32xf32> to vector<8x32xf32>
    %20 = arith.mulf %18, %19 : vector<8x32xf32>
    %c0_6 = arith.constant 0 : index
    %c0_7 = arith.constant 0 : index
    %21 = vector.load %arg4[%c0_6, %c0_7] : memref<8x32xf32, #tpu.memory_space<vmem>>, vector<8x32xf32>
    tpu.vector_store %arg4[%c0_6, %c0_7], %20 {strides = array<i32>} : memref<8x32xf32, #tpu.memory_space<vmem>>, vector<8x32xf32>,
    %c0_8 = arith.constant 0 : index
    %c0_9 = arith.constant 0 : index
    %22 = vector.load %arg5[%c0_8, %c0_9] : memref<1x32xf32, #tpu.memory_space<vmem>>, vector<1x32xf32>
    tpu.vector_store %arg5[%c0_8, %c0_9], %15 {strides = array<i32>} : memref<1x32xf32, #tpu.memory_space<vmem>>, vector<1x32xf32>,
    %cst_10 = arith.constant 1.000000e-01 : f32
    %23 = vector.broadcast %cst_10 : f32 to vector<1x32xf32>
    %24 = arith.mulf %23, %7 : vector<1x32xf32>
    %c0_11 = arith.constant 0 : index
    %c0_12 = arith.constant 0 : index
    %25 = vector.load %arg2[%c0_11, %c0_12] : memref<1x32xf32, #tpu.memory_space<vmem>>, vector<1x32xf32>
    %cst_13 = arith.constant 0.899999976 : f32
    %26 = vector.broadcast %cst_13 : f32 to vector<1x32xf32>
    %27 = arith.mulf %26, %25 : vector<1x32xf32>
    %28 = arith.addf %24, %27 : vector<1x32xf32>
    %c0_14 = arith.constant 0 : index
    %c0_15 = arith.constant 0 : index
    %29 = vector.load %arg6[%c0_14, %c0_15] : memref<1x32xf32, #tpu.memory_space<vmem>>, vector<1x32xf32>
    tpu.vector_store %arg6[%c0_14, %c0_15], %28 {strides = array<i32>} : memref<1x32xf32, #tpu.memory_space<vmem>>, vector<1x32xf32>,
    %cst_16 = arith.constant 1.000000e-01 : f32
    %30 = vector.broadcast %cst_16 : f32 to vector<1x32xf32>
    %31 = arith.mulf %30, %13 : vector<1x32xf32>
    %c0_17 = arith.constant 0 : index
    %c0_18 = arith.constant 0 : index
    %32 = vector.load %arg3[%c0_17, %c0_18] : memref<1x32xf32, #tpu.memory_space<vmem>>, vector<1x32xf32>
    %cst_19 = arith.constant 0.899999976 : f32
    %33 = vector.broadcast %cst_19 : f32 to vector<1x32xf32>
    %34 = arith.mulf %33, %32 : vector<1x32xf32>
    %35 = arith.addf %31, %34 : vector<1x32xf32>
    %c0_20 = arith.constant 0 : index
    %c0_21 = arith.constant 0 : index
    %36 = vector.load %arg7[%c0_20, %c0_21] : memref<1x32xf32, #tpu.memory_space<vmem>>, vector<1x32xf32>
    tpu.vector_store %arg7[%c0_20, %c0_21], %35 {strides = array<i32>} : memref<1x32xf32, #tpu.memory_space<vmem>>, vector<1x32xf32>,
    return
  }
  func.func @transform_0(%arg0: i32) -> (i32, i32) {
    %c0_i32 = arith.constant 0 : i32
    %c0_i32_0 = arith.constant 0 : i32
    return %c0_i32, %arg0 : i32, i32
  }
  func.func @transform_1(%arg0: i32) -> (i32, i32) {
    %c0_i32 = arith.constant 0 : i32
    %c0_i32_0 = arith.constant 0 : i32
    return %c0_i32, %arg0 : i32, i32
  }
  func.func @transform_2(%arg0: i32) -> (i32, i32) {
    %c0_i32 = arith.constant 0 : i32
    %c0_i32_0 = arith.constant 0 : i32
    return %c0_i32, %arg0 : i32, i32
  }
  func.func @transform_3(%arg0: i32) -> (i32, i32) {
    %c0_i32 = arith.constant 0 : i32
    %c0_i32_0 = arith.constant 0 : i32
    return %c0_i32, %arg0 : i32, i32
  }
  func.func @transform_4(%arg0: i32) -> (i32, i32) {
    %c0_i32 = arith.constant 0 : i32
    %c0_i32_0 = arith.constant 0 : i32
    return %c0_i32, %arg0 : i32, i32
  }
  func.func @transform_5(%arg0: i32) -> (i32, i32) {
    %c0_i32 = arith.constant 0 : i32
    %c0_i32_0 = arith.constant 0 : i32
    return %c0_i32, %arg0 : i32, i32
  }
  func.func @transform_6(%arg0: i32) -> (i32, i32) {
    %c0_i32 = arith.constant 0 : i32
    %c0_i32_0 = arith.constant 0 : i32
    return %c0_i32, %arg0 : i32, i32
  }
}

</mosaic_0001>

<llo_original>
// kernel: tpu_custom_call.1
$region0: #{tpu_custom_call.1}
  #allocation0 [shape = 'u32[]', space=smem, size = 0x4, offset = 0x4, fixed_abs, tag = 'smem constant byte address 0x4 - core index']
  #allocation1 [shape = 'u32[144,128]{1,0:T(1,128)}', space=vmem, size = 0x12000, scoped, tag = 'internal scratch']
  %s0 = inlined_call_operand.hbm [shape: f32[8,32], index: 0, kind: input, shape index: {}]
  %s1 = inlined_call_operand.vmem [shape: f32[1,32], index: 1, kind: input, shape index: {}]
  %s2 = inlined_call_operand.vmem [shape: f32[1,32], index: 2, kind: input, shape index: {}]
  %s3 = inlined_call_operand.hbm [shape: f32[8,32], index: 3, kind: output, shape index: {0}]
  %s4 = inlined_call_operand.hbm [shape: f32[1,32], index: 4, kind: output, shape index: {1}]
  %s5 = inlined_call_operand.hbm [shape: f32[1,32], index: 5, kind: output, shape index: {2}]
  %s6 = inlined_call_operand.hbm [shape: f32[1,32], index: 6, kind: output, shape index: {3}]
  %7 = xla_tuple %s3, %s4, %s5, %s6
  %s8 = sld [smem:[#allocation0]]
  $region50: #{tpu_custom_call.1} parent=0
    _
  %s10 = ssub.s32 1, %s8
  %s11 = scalar_select 0, %s10, %s8
  $region1: #{tpu_custom_call.1} parent=0
    #allocation2 [shape = 'u8[4096]{0}', space=vmem, size = 0x1000, scoped, tag = 'input window, operand 0, single buffered']
    #allocation3 [shape = 's32[1]{0}', space=sflag, size = 0x4, scoped, tag = 'scoped memory for tpu_custom_call.1']
    #allocation4 [shape = 's32[1]{0}', space=sflag, size = 0x4, scoped, tag = 'scoped memory for tpu_custom_call.1']
    #allocation5 [shape = 'u8[4096]{0}', space=vmem, size = 0x1000, scoped, tag = 'output window, operand 0, single buffered']
    #allocation6 [shape = 'u8[512]{0}', space=vmem, size = 0x400, scoped, tag = 'output window, operand 1, single buffered']
    #allocation7 [shape = 's32[1]{0}', space=sflag, size = 0x4, scoped, tag = 'scoped memory for tpu_custom_call.1']
    #allocation8 [shape = 'u8[512]{0}', space=vmem, size = 0x400, scoped, tag = 'output window, operand 2, single buffered']
    #allocation9 [shape = 'u8[512]{0}', space=vmem, size = 0x400, scoped, tag = 'output window, operand 3, single buffered']
    #allocation10 [shape = 's32[1]{0}', space=sflag, size = 0x4, scoped, tag = 'scoped memory for tpu_custom_call.1']
    %12 = vsyncpa [#allocation3], 0
    %13 = vsyncpa [#allocation4], 0
    %14 = vsyncpa [#allocation7], 0
    %15 = vsyncpa [#allocation10], 0
    // Predicated region
    $region2: #{tpu_custom_call.1} parent=1 // pred_check
      _
    $region3: #{tpu_custom_call.1} parent=1 // pred_check_branch
      %17 = sbr.rel (0) target = $region5
    $region4: #{tpu_custom_call.1} parent=1 // pred_region
      %s19 = ssub.s32 128, 128
      %20 = vsyncadd [#allocation3], %s19
      %s22 = sshll.u32 [#allocation2], 4
      %s23 = int_to_ptr.vmem [resolvable:$true] %s22
      %25 = dma.hbm_to_vmem [thread:$0]  %s0, 128, %s23, [#allocation3]
    $region5: #{tpu_custom_call.1} parent=1 // pred_fallthru
      _
    // Predicated region
    $region6: #{tpu_custom_call.1} parent=1 // pred_check
      _
    $region7: #{tpu_custom_call.1} parent=1 // pred_check_branch
      %27 = sbr.rel (0) target = $region9
    $region8: #{tpu_custom_call.1} parent=1 // pred_region
      _
    $region9: #{tpu_custom_call.1} parent=1 // pred_fallthru
      _
    // Predicated region
    $region10: #{tpu_custom_call.1} parent=1 // pred_check
      _
    $region11: #{tpu_custom_call.1} parent=1 // pred_check_branch
      %29 = sbr.rel (0) target = $region13
    $region12: #{tpu_custom_call.1} parent=1 // pred_region
      _
    $region13: #{tpu_custom_call.1} parent=1 // pred_fallthru
      _
    // Predicated region
    $region14: #{tpu_custom_call.1} parent=1 // pred_check
      _
    $region15: #{tpu_custom_call.1} parent=1 // pred_check_branch
      %31 = sbr.rel (0) target = $region17
    $region16: #{tpu_custom_call.1} parent=1 // pred_region
      %32 = dma.done [#allocation3], 128
    $region17: #{tpu_custom_call.1} parent=1 // pred_fallthru
      _
    %v33 = vld [vmem:[#allocation2] sm:$0xff]
    %vm34 = vcmask 261120
    %v35 = vsel %vm34, %v33, 0.0
    %v36 = vrot.slane %v35, 4
    %v37 = vadd.f32 %v35, %v36
    %v38 = vrot.slane %v37, 2
    %v39 = vadd.f32 %v37, %v38
    %v40 = vrot.slane %v39, 1
    %v41 = vadd.f32 %v39, %v40
    %v42 = vmul.f32 %v33, %v33
    %v43 = vsel %vm34, %v42, 0.0
    %v44 = vrot.slane %v43, 4
    %v45 = vadd.f32 %v43, %v44
    %v46 = vrot.slane %v45, 2
    %v47 = vadd.f32 %v45, %v46
    %v48 = vrot.slane %v47, 1
    %v49 = vadd.f32 %v47, %v48
    %v50 = vmul.f32 %v41, 0.125
    %v51 = vmul.f32 %v49, 0.125
    %v52 = vmul.f32 %v50, %v50
    %v53 = vsub.f32 %v51, %v52
    %v54 = vmax.f32 %v53, 0.0
    %v55 = vadd.f32 %v54, 1e-06
    %v56 = vrsqrt.pop %v55
    %v57 = vsub.f32 %v33, %v50
    %v58 = vmul.f32 %v57, %v56
    %59 = vst.msk [vmem:[#allocation5] sm:$0xff] %vm34, %v58
    %vm60 = vcmask 253952
    %61 = vst.msk [vmem:[#allocation6] sm:$0x1] %vm60, %v55
    %v62 = vmul.f32 %v50, 0.1
    %v63 = vld [vmem:[%s1] sm:$0x1]
    %v64 = vmul.f32 %v63, 0.9
    %v65 = vadd.f32 %v62, %v64
    %66 = vst.msk [vmem:[#allocation8] sm:$0x1] %vm60, %v65
    %v67 = vmul.f32 %v54, 0.1
    %v68 = vld [vmem:[%s2] sm:$0x1]
    %v69 = vmul.f32 %v68, 0.9
    %v70 = vadd.f32 %v67, %v69
    %71 = vst.msk [vmem:[#allocation9] sm:$0x1] %vm60, %v70
    // Predicated region
    $region18: #{tpu_custom_call.1} parent=1 // pred_check
      _
    $region19: #{tpu_custom_call.1} parent=1 // pred_check_branch
      %73 = sbr.rel (0) target = $region21
    $region20: #{tpu_custom_call.1} parent=1 // pred_region
      %s75 = ssub.s32 128, 128
      %76 = vsyncadd [#allocation4], %s75
      %s78 = sshll.u32 [#allocation5], 4
      %s79 = int_to_ptr.vmem [resolvable:$true] %s78
      %81 = dma.vmem_to_hbm [thread:$0]  %s79, 128, %s3, [#allocation4]
    $region21: #{tpu_custom_call.1} parent=1 // pred_fallthru
      _
    // Predicated region
    $region22: #{tpu_custom_call.1} parent=1 // pred_check
      _
    $region23: #{tpu_custom_call.1} parent=1 // pred_check_branch
      %83 = sbr.rel (0) target = $region25
    $region24: #{tpu_custom_call.1} parent=1 // pred_region
      %s85 = ssub.s32 16, 16
      %86 = vsyncadd [#allocation7], %s85
      %s88 = sshll.u32 [#allocation6], 4
      %s89 = int_to_ptr.vmem [resolvable:$true] %s88
      %91 = dma.vmem_to_hbm [thread:$0]  %s89, 16, %s4, [#allocation7]
    $region25: #{tpu_custom_call.1} parent=1 // pred_fallthru
      _
    // Predicated region
    $region26: #{tpu_custom_call.1} parent=1 // pred_check
      _
    $region27: #{tpu_custom_call.1} parent=1 // pred_check_branch
      %93 = sbr.rel (0) target = $region29
    $region28: #{tpu_custom_call.1} parent=1 // pred_region
      %s95 = ssub.s32 16, 16
      %96 = vsyncadd [#allocation7], %s95
      %s98 = sshll.u32 [#allocation8], 4
      %s99 = int_to_ptr.vmem [resolvable:$true] %s98
      %101 = dma.vmem_to_hbm [thread:$0]  %s99, 16, %s5, [#allocation7]
    $region29: #{tpu_custom_call.1} parent=1 // pred_fallthru
      _
    // Predicated region
    $region30: #{tpu_custom_call.1} parent=1 // pred_check
      _
    $region31: #{tpu_custom_call.1} parent=1 // pred_check_branch
      %103 = sbr.rel (0) target = $region33
    $region32: #{tpu_custom_call.1} parent=1 // pred_region
      %s105 = ssub.s32 16, 16
      %106 = vsyncadd [#allocation10], %s105
      %s108 = sshll.u32 [#allocation9], 4
      %s109 = int_to_ptr.vmem [resolvable:$true] %s108
      %111 = dma.vmem_to_hbm [thread:$0]  %s109, 16, %s6, [#allocation10]
    $region33: #{tpu_custom_call.1} parent=1 // pred_fallthru
      _
    // Predicated region
    $region34: #{tpu_custom_call.1} parent=1 // pred_check
      _
    $region35: #{tpu_custom_call.1} parent=1 // pred_check_branch
      %113 = sbr.rel (0) target = $region37
    $region36: #{tpu_custom_call.1} parent=1 // pred_region
      %114 = dma.done [#allocation4], 128
    $region37: #{tpu_custom_call.1} parent=1 // pred_fallthru
      _
    // Predicated region
    $region38: #{tpu_custom_call.1} parent=1 // pred_check
      _
    $region39: #{tpu_custom_call.1} parent=1 // pred_check_branch
      %116 = sbr.rel (0) target = $region41
    $region40: #{tpu_custom_call.1} parent=1 // pred_region
      %117 = dma.done [#allocation7], 16
    $region41: #{tpu_custom_call.1} parent=1 // pred_fallthru
      _
    // Predicated region
    $region42: #{tpu_custom_call.1} parent=1 // pred_check
      _
    $region43: #{tpu_custom_call.1} parent=1 // pred_check_branch
      %119 = sbr.rel (0) target = $region45
    $region44: #{tpu_custom_call.1} parent=1 // pred_region
      %120 = dma.done [#allocation7], 16
    $region45: #{tpu_custom_call.1} parent=1 // pred_fallthru
      _
    // Predicated region
    $region46: #{tpu_custom_call.1} parent=1 // pred_check
      _
    $region47: #{tpu_custom_call.1} parent=1 // pred_check_branch
      %122 = sbr.rel (0) target = $region49
    $region48: #{tpu_custom_call.1} parent=1 // pred_region
      %123 = dma.done [#allocation10], 16
    $region49: #{tpu_custom_call.1} parent=1 // pred_fallthru
      _
    %124 = vsyncpa [#allocation3], 1
    %125 = vsyncpa [#allocation4], 1
    %126 = vsyncpa [#allocation7], 1
    %127 = vsyncpa [#allocation10], 1

</llo_original>
